<compile_context>
chip_gen: v6e
topology: v6e:2x2x1
jax: 0.10.0
libtpu: 0.0.40
codegen_flags: <defaults>
</compile_context>

<pallas_src>
import functools
import math

import jax
import jax.numpy as jnp
from jax import lax
from jax.experimental import pallas as pl
from jax.experimental.pallas import tpu as pltpu


# ---------------------------------------------------------------------------
# Fused kernel: 1x1 conv -> argmax over classes -> nearest resize -> int32
# ---------------------------------------------------------------------------
def _fused_seg_kernel(x_ref, w_ref, bias_ref, selh_ref, selwt_ref, o_ref,
                      idx_scratch, *, row_chunk):
    # x_ref:       (B, Cin, TH, W) VMEM f32   (NCHW block, B images, TH rows)
    # w_ref:       (K, Cin)        SMEM f32   (1x1-conv weight)
    # bias_ref:    (K,)            SMEM f32   (1x1-conv bias)
    # selh_ref:    (OHB, TH)       VMEM bf16  (one-hot nearest-H selector, row tile)
    # selwt_ref:   (W, OW)         VMEM bf16  (one-hot nearest-W selector, transposed)
    # o_ref:       (B, OHB, OW)    VMEM int32
    # idx_scratch: (TH, W)         VMEM bf16  (per-image class map)
    B, Cin, TH, W = x_ref.shape
    K = w_ref.shape[0]
    n_chunks = TH // row_chunk

    # Hoist SMEM scalar reads once; reused by every chunk and image.
    wk = [[w_ref[k, c] for c in range(Cin)] for k in range(K)]
    bk = [bias_ref[k] for k in range(K)]

    for img in range(B):

        def chunk_body(ci, carry):
            start = ci * row_chunk
            if not isinstance(start, int):
                start = pl.multiple_of(start, row_chunk)
            rows = pl.ds(start, row_chunk)
            xc = [x_ref[img, c, rows, :] for c in range(Cin)]   # Cin x (row_chunk, W)

            def logits_for(k):
                acc = xc[0] * wk[k][0]
                for c in range(1, Cin):
                    acc = acc + xc[c] * wk[k][c]
                return acc + bk[k]

            # Channel argmax, first-occurrence tie-break (strict '>').
            best_val = logits_for(0)
            best_idx = jnp.zeros((row_chunk, W), dtype=jnp.float32)
            for k in range(1, K):
                lk = logits_for(k)
                best_idx = jnp.where(lk > best_val, jnp.float32(k), best_idx)
                best_val = jnp.maximum(best_val, lk)        # vmax, not cmp+select
            # Class ids are exact in bf16 while K <= 256.
            idx_scratch[rows, :] = best_idx.astype(jnp.bfloat16)
            return carry

        if n_chunks == 1:
            chunk_body(0, 0)
        else:
            lax.fori_loop(0, n_chunks, chunk_body, 0)

        # Nearest-neighbor resize as two one-hot selection matmuls on the MXU
        # (bf16 x bf16 -> f32, exact), then the final `.int()` cast at the store.
        tmp = jnp.dot(selh_ref[...], idx_scratch[...],
                      preferred_element_type=jnp.float32)          # (OHB, W)
        out = jnp.dot(tmp.astype(jnp.bfloat16), selwt_ref[...],
                      preferred_element_type=jnp.float32)          # (OHB, OW)
        # TODO(synk): OW < 128 means a masked (partial-lane) store on v5e; production
        # OW should be a multiple of 128 for a fully lane-dense store.
        o_ref[img] = out.astype(jnp.int32)


def _largest_divisor(n, candidates):
    for c in candidates:
        if c <= n and n % c == 0:
            return c
    return n


def fused_seg(x_nchw, w2, b1, sel_h, sel_w_t):
    N, Cin, H, W = x_nchw.shape
    K = w2.shape[0]
    OH = sel_h.shape[0]
    OW = sel_w_t.shape[1]

    # Row tiling (grid axis 1): only when the tile keeps every BlockSpec
    # (8,128)-compliant (tile a multiple of 128) and the vertical scale is integer
    # (so output rows of tile r depend only on input rows of tile r).
    TH = H
    if OH % H == 0:
        cand = _largest_divisor(H, (512, 384, 256, 128))
        if cand % 128 == 0:
            TH = cand
    row_tiles = H // TH
    OHB = OH // row_tiles

    # Batch tiling (grid axis 0): amortize per-grid-step overhead while keeping the
    # double-buffered blocks comfortably under the default scoped-VMEM limit.
    per_img_bytes = Cin * TH * W * 4 + OHB * OW * 4
    B = max(1, min(N, (2 * 1024 * 1024) // max(per_img_bytes, 1)))
    batch_tiles = pl.cdiv(N, B)

    # Inner row chunk: bounds live vregs at large plane sizes; neutral for small H.
    row_chunk = _largest_divisor(TH, (32, 16, 8))

    # Roofline note: at small Cin/K the kernel is VALU-bound (conv FMAs + argmax
    # cmp/select), not HBM-bound; the resize rides the MXU slot.
    valu_flops = N * H * W * (2 * Cin * K + 3 * (K - 1))
    mxu_flops = N * (2 * OH * H * W + 2 * OH * W * OW)
    bytes_accessed = (N * Cin * H * W * 4 + N * OH * OW * 4
                      + OH * H * 2 + W * OW * 2 + K * Cin * 4 + K * 4)

    kernel = functools.partial(_fused_seg_kernel, row_chunk=row_chunk)

    return pl.pallas_call(
        kernel,
        out_shape=jax.ShapeDtypeStruct((N, OH, OW), jnp.int32),
        grid_spec=pltpu.PrefetchScalarGridSpec(
            num_scalar_prefetch=0,
            grid=(batch_tiles, row_tiles),
            in_specs=[
                pl.BlockSpec((B, Cin, TH, W), lambda bi, ri: (bi, 0, ri, 0)),
                pl.BlockSpec(memory_space=pltpu.MemorySpace.SMEM),   # w2: (K, Cin)
                pl.BlockSpec(memory_space=pltpu.MemorySpace.SMEM),   # b1: (K,)
                pl.BlockSpec((OHB, TH), lambda bi, ri: (ri, ri)),    # sel_h  (bf16)
                pl.BlockSpec((W, OW), lambda bi, ri: (0, 0)),        # sel_w_t (bf16)
            ],
            out_specs=pl.BlockSpec((B, OHB, OW), lambda bi, ri: (bi, ri, 0)),
            scratch_shapes=[pltpu.VMEM((TH, W), jnp.bfloat16)],
        ),
        compiler_params=pltpu.CompilerParams(
            dimension_semantics=("parallel", "parallel"),
        ),
        cost_estimate=pl.CostEstimate(
            flops=valu_flops + mxu_flops, transcendentals=0,
            bytes_accessed=bytes_accessed),
    )(x_nchw, w2, b1, sel_h, sel_w_t)


# ---------------------------------------------------------------------------
# Wrapper reproducing OnnxNet.forward
# ---------------------------------------------------------------------------
def _nearest_src_indices(out_size, in_size):
    # PyTorch F.interpolate(mode='nearest') / ONNX nearest_mode='floor':
    #   src = min(floor(dst * in/out), in - 1), computed in Python doubles.
    scale = in_size / out_size
    return [min(int(math.floor(i * scale)), in_size - 1) for i in range(out_size)]


@functools.partial(jax.jit, static_argnames=("size",))
def onnx_net_forward(x_nchw, w_conv, b_conv, *, size):
    # x_nchw: (N, Cin, H, W) f32.  size: static (OH, OW).
    # TODO(synk): PyTorch passes `size` as a runtime tensor; JAX needs static output
    # shapes, so it is a static tuple here.
    N, Cin, H, W = x_nchw.shape
    OH, OW = size
    K = w_conv.shape[0]

    w2 = w_conv.reshape(K, Cin)      # (K, Cin, 1, 1) -> (K, Cin), free reshape
    b1 = b_conv.reshape(K)

    src_h = jnp.array(_nearest_src_indices(OH, H), dtype=jnp.int32)
    src_w = jnp.array(_nearest_src_indices(OW, W), dtype=jnp.int32)
    sel_h = jax.nn.one_hot(src_h, H, dtype=jnp.bfloat16)           # (OH, H)
    sel_w_t = jax.nn.one_hot(src_w, W, dtype=jnp.bfloat16).T       # (W, OW)

    out = fused_seg(x_nchw, w2, b1, sel_h, sel_w_t)                # (N, OH, OW) int32
    return out[:, None, :, :]                                      # keepdim -> (N,1,OH,OW)


# ---------------------------------------------------------------------------
# Pure-JAX reference (correctness check)
# ---------------------------------------------------------------------------
def reference_forward(x_nchw, w_conv, b_conv, size):
    N, Cin, H, W = x_nchw.shape
    OH, OW = size
    K = w_conv.shape[0]
    logits = (jnp.einsum("nchw,kc->nkhw", x_nchw, w_conv.reshape(K, Cin))
              + b_conv[None, :, None, None])
    cls_map = jnp.argmax(logits, axis=1)                           # (N, H, W)
    src_h = jnp.array(_nearest_src_indices(OH, H), dtype=jnp.int32)
    src_w = jnp.array(_nearest_src_indices(OW, W), dtype=jnp.int32)
    res = cls_map[:, src_h, :][:, :, src_w]
    return res.astype(jnp.int32)[:, None, :, :]


if __name__ == "__main__":
    key = jax.random.PRNGKey(0)
    kx, kw, kb = jax.random.split(key, 3)

    N, Cin, H, W = 2, 4, 16, 16
    NUM_CLASSES = 8

    x = jax.random.normal(kx, (N, Cin, H, W), dtype=jnp.float32)
    # Conv2d(Cin, NUM_CLASSES, kernel_size=1) parameters
    w_conv = jax.random.normal(kw, (NUM_CLASSES, Cin, 1, 1), dtype=jnp.float32) * 0.1
    b_conv = jax.random.normal(kb, (NUM_CLASSES,), dtype=jnp.float32) * 0.1

    for size in ((32, 32), (40, 24)):      # integer and fractional nearest scales
        out = onnx_net_forward(x, w_conv, b_conv, size=size)
        out = jax.block_until_ready(out)
        ref = reference_forward(x, w_conv, b_conv, size)
        assert out.shape == (N, 1, size[0], size[1]), out.shape
        assert out.dtype == jnp.int32
        assert bool(jnp.all(out == ref)), f"mismatch vs pure-JAX reference at size={size}"

    print("KERNEL_OK")
</pallas_src>

<mosaic_0001>
module attributes {stable_mosaic.version = 11 : i64} {
  func.func @_fused_seg_kernel(%arg0: i32, %arg1: i32, %arg2: memref<2x4x16x16xf32, #tpu.memory_space<vmem>>, %arg3: memref<8x4xf32, #tpu.memory_space<smem>>, %arg4: memref<8xf32, #tpu.memory_space<smem>>, %arg5: memref<32x16xbf16, #tpu.memory_space<vmem>>, %arg6: memref<16x32xbf16, #tpu.memory_space<vmem>>, %arg7: memref<2x32x32xi32, #tpu.memory_space<vmem>>, %arg8: memref<16x16xbf16, #tpu.memory_space<vmem>>) attributes {dimension_semantics = [#tpu.dimension_semantics<parallel>, #tpu.dimension_semantics<parallel>], iteration_bounds = array<i64: 1, 1>, scalar_prefetch = 0 : i64, scratch_operands = 1 : i64, tpu.core_type = #tpu.core_type<tc>, window_params = [{transform_indices = @transform_0, window_bounds = array<i64: 2, 4, 16, 16>}, {transform_indices = @transform_1, window_bounds = array<i64: 8, 4>}, {transform_indices = @transform_2, window_bounds = array<i64: 8>}, {transform_indices = @transform_3, window_bounds = array<i64: 32, 16>}, {pipeline_mode = #tpu.pipeline_mode<synchronous>, transform_indices = @transform_4, window_bounds = array<i64: 16, 32>}, {transform_indices = @transform_5, window_bounds = array<i64: 2, 32, 32>}]} {
    %c0 = arith.constant 0 : index
    %c0_0 = arith.constant 0 : index
    %0 = memref.load %arg3[%c0, %c0_0] : memref<8x4xf32, #tpu.memory_space<smem>>
    %c0_1 = arith.constant 0 : index
    %c1 = arith.constant 1 : index
    %1 = memref.load %arg3[%c0_1, %c1] : memref<8x4xf32, #tpu.memory_space<smem>>
    %c0_2 = arith.constant 0 : index
    %c2 = arith.constant 2 : index
    %2 = memref.load %arg3[%c0_2, %c2] : memref<8x4xf32, #tpu.memory_space<smem>>
    %c0_3 = arith.constant 0 : index
    %c3 = arith.constant 3 : index
    %3 = memref.load %arg3[%c0_3, %c3] : memref<8x4xf32, #tpu.memory_space<smem>>
    %c1_4 = arith.constant 1 : index
    %c0_5 = arith.constant 0 : index
    %4 = memref.load %arg3[%c1_4, %c0_5] : memref<8x4xf32, #tpu.memory_space<smem>>
    %c1_6 = arith.constant 1 : index
    %c1_7 = arith.constant 1 : index
    %5 = memref.load %arg3[%c1_6, %c1_7] : memref<8x4xf32, #tpu.memory_space<smem>>
    %c1_8 = arith.constant 1 : index
    %c2_9 = arith.constant 2 : index
    %6 = memref.load %arg3[%c1_8, %c2_9] : memref<8x4xf32, #tpu.memory_space<smem>>
    %c1_10 = arith.constant 1 : index
    %c3_11 = arith.constant 3 : index
    %7 = memref.load %arg3[%c1_10, %c3_11] : memref<8x4xf32, #tpu.memory_space<smem>>
    %c2_12 = arith.constant 2 : index
    %c0_13 = arith.constant 0 : index
    %8 = memref.load %arg3[%c2_12, %c0_13] : memref<8x4xf32, #tpu.memory_space<smem>>
    %c2_14 = arith.constant 2 : index
    %c1_15 = arith.constant 1 : index
    %9 = memref.load %arg3[%c2_14, %c1_15] : memref<8x4xf32, #tpu.memory_space<smem>>
    %c2_16 = arith.constant 2 : index
    %c2_17 = arith.constant 2 : index
    %10 = memref.load %arg3[%c2_16, %c2_17] : memref<8x4xf32, #tpu.memory_space<smem>>
    %c2_18 = arith.constant 2 : index
    %c3_19 = arith.constant 3 : index
    %11 = memref.load %arg3[%c2_18, %c3_19] : memref<8x4xf32, #tpu.memory_space<smem>>
    %c3_20 = arith.constant 3 : index
    %c0_21 = arith.constant 0 : index
    %12 = memref.load %arg3[%c3_20, %c0_21] : memref<8x4xf32, #tpu.memory_space<smem>>
    %c3_22 = arith.constant 3 : index
    %c1_23 = arith.constant 1 : index
    %13 = memref.load %arg3[%c3_22, %c1_23] : memref<8x4xf32, #tpu.memory_space<smem>>
    %c3_24 = arith.constant 3 : index
    %c2_25 = arith.constant 2 : index
    %14 = memref.load %arg3[%c3_24, %c2_25] : memref<8x4xf32, #tpu.memory_space<smem>>
    %c3_26 = arith.constant 3 : index
    %c3_27 = arith.constant 3 : index
    %15 = memref.load %arg3[%c3_26, %c3_27] : memref<8x4xf32, #tpu.memory_space<smem>>
    %c4 = arith.constant 4 : index
    %c0_28 = arith.constant 0 : index
    %16 = memref.load %arg3[%c4, %c0_28] : memref<8x4xf32, #tpu.memory_space<smem>>
    %c4_29 = arith.constant 4 : index
    %c1_30 = arith.constant 1 : index
    %17 = memref.load %arg3[%c4_29, %c1_30] : memref<8x4xf32, #tpu.memory_space<smem>>
    %c4_31 = arith.constant 4 : index
    %c2_32 = arith.constant 2 : index
    %18 = memref.load %arg3[%c4_31, %c2_32] : memref<8x4xf32, #tpu.memory_space<smem>>
    %c4_33 = arith.constant 4 : index
    %c3_34 = arith.constant 3 : index
    %19 = memref.load %arg3[%c4_33, %c3_34] : memref<8x4xf32, #tpu.memory_space<smem>>
    %c5 = arith.constant 5 : index
    %c0_35 = arith.constant 0 : index
    %20 = memref.load %arg3[%c5, %c0_35] : memref<8x4xf32, #tpu.memory_space<smem>>
    %c5_36 = arith.constant 5 : index
    %c1_37 = arith.constant 1 : index
    %21 = memref.load %arg3[%c5_36, %c1_37] : memref<8x4xf32, #tpu.memory_space<smem>>
    %c5_38 = arith.constant 5 : index
    %c2_39 = arith.constant 2 : index
    %22 = memref.load %arg3[%c5_38, %c2_39] : memref<8x4xf32, #tpu.memory_space<smem>>
    %c5_40 = arith.constant 5 : index
    %c3_41 = arith.constant 3 : index
    %23 = memref.load %arg3[%c5_40, %c3_41] : memref<8x4xf32, #tpu.memory_space<smem>>
    %c6 = arith.constant 6 : index
    %c0_42 = arith.constant 0 : index
    %24 = memref.load %arg3[%c6, %c0_42] : memref<8x4xf32, #tpu.memory_space<smem>>
    %c6_43 = arith.constant 6 : index
    %c1_44 = arith.constant 1 : index
    %25 = memref.load %arg3[%c6_43, %c1_44] : memref<8x4xf32, #tpu.memory_space<smem>>
    %c6_45 = arith.constant 6 : index
    %c2_46 = arith.constant 2 : index
    %26 = memref.load %arg3[%c6_45, %c2_46] : memref<8x4xf32, #tpu.memory_space<smem>>
    %c6_47 = arith.constant 6 : index
    %c3_48 = arith.constant 3 : index
    %27 = memref.load %arg3[%c6_47, %c3_48] : memref<8x4xf32, #tpu.memory_space<smem>>
    %c7 = arith.constant 7 : index
    %c0_49 = arith.constant 0 : index
    %28 = memref.load %arg3[%c7, %c0_49] : memref<8x4xf32, #tpu.memory_space<smem>>
    %c7_50 = arith.constant 7 : index
    %c1_51 = arith.constant 1 : index
    %29 = memref.load %arg3[%c7_50, %c1_51] : memref<8x4xf32, #tpu.memory_space<smem>>
    %c7_52 = arith.constant 7 : index
    %c2_53 = arith.constant 2 : index
    %30 = memref.load %arg3[%c7_52, %c2_53] : memref<8x4xf32, #tpu.memory_space<smem>>
    %c7_54 = arith.constant 7 : index
    %c3_55 = arith.constant 3 : index
    %31 = memref.load %arg3[%c7_54, %c3_55] : memref<8x4xf32, #tpu.memory_space<smem>>
    %c0_56 = arith.constant 0 : index
    %32 = memref.load %arg4[%c0_56] : memref<8xf32, #tpu.memory_space<smem>>
    %c1_57 = arith.constant 1 : index
    %33 = memref.load %arg4[%c1_57] : memref<8xf32, #tpu.memory_space<smem>>
    %c2_58 = arith.constant 2 : index
    %34 = memref.load %arg4[%c2_58] : memref<8xf32, #tpu.memory_space<smem>>
    %c3_59 = arith.constant 3 : index
    %35 = memref.load %arg4[%c3_59] : memref<8xf32, #tpu.memory_space<smem>>
    %c4_60 = arith.constant 4 : index
    %36 = memref.load %arg4[%c4_60] : memref<8xf32, #tpu.memory_space<smem>>
    %c5_61 = arith.constant 5 : index
    %37 = memref.load %arg4[%c5_61] : memref<8xf32, #tpu.memory_space<smem>>
    %c6_62 = arith.constant 6 : index
    %38 = memref.load %arg4[%c6_62] : memref<8xf32, #tpu.memory_space<smem>>
    %c7_63 = arith.constant 7 : index
    %39 = memref.load %arg4[%c7_63] : memref<8xf32, #tpu.memory_space<smem>>
    %c0_64 = arith.constant 0 : index
    %c0_65 = arith.constant 0 : index
    %c0_66 = arith.constant 0 : index
    %c0_67 = arith.constant 0 : index
    %40 = vector.load %arg2[%c0_64, %c0_65, %c0_66, %c0_67] : memref<2x4x16x16xf32, #tpu.memory_space<vmem>>, vector<1x1x16x16xf32>
    %41 = vector.shape_cast %40 : vector<1x1x16x16xf32> to vector<16x16xf32>
    %c0_68 = arith.constant 0 : index
    %c1_69 = arith.constant 1 : index
    %c0_70 = arith.constant 0 : index
    %c0_71 = arith.constant 0 : index
    %42 = vector.load %arg2[%c0_68, %c1_69, %c0_70, %c0_71] : memref<2x4x16x16xf32, #tpu.memory_space<vmem>>, vector<1x1x16x16xf32>
    %43 = vector.shape_cast %42 : vector<1x1x16x16xf32> to vector<16x16xf32>
    %c0_72 = arith.constant 0 : index
    %c2_73 = arith.constant 2 : index
    %c0_74 = arith.constant 0 : index
    %c0_75 = arith.constant 0 : index
    %44 = vector.load %arg2[%c0_72, %c2_73, %c0_74, %c0_75] : memref<2x4x16x16xf32, #tpu.memory_space<vmem>>, vector<1x1x16x16xf32>
    %45 = vector.shape_cast %44 : vector<1x1x16x16xf32> to vector<16x16xf32>
    %c0_76 = arith.constant 0 : index
    %c3_77 = arith.constant 3 : index
    %c0_78 = arith.constant 0 : index
    %c0_79 = arith.constant 0 : index
    %46 = vector.load %arg2[%c0_76, %c3_77, %c0_78, %c0_79] : memref<2x4x16x16xf32, #tpu.memory_space<vmem>>, vector<1x1x16x16xf32>
    %47 = vector.shape_cast %46 : vector<1x1x16x16xf32> to vector<16x16xf32>
    %48 = vector.broadcast %0 : f32 to vector<16x16xf32>
    %49 = arith.mulf %41, %48 : vector<16x16xf32>
    %50 = vector.broadcast %1 : f32 to vector<16x16xf32>
    %51 = arith.mulf %43, %50 : vector<16x16xf32>
    %52 = arith.addf %49, %51 : vector<16x16xf32>
    %53 = vector.broadcast %2 : f32 to vector<16x16xf32>
    %54 = arith.mulf %45, %53 : vector<16x16xf32>
    %55 = arith.addf %52, %54 : vector<16x16xf32>
    %56 = vector.broadcast %3 : f32 to vector<16x16xf32>
    %57 = arith.mulf %47, %56 : vector<16x16xf32>
    %58 = arith.addf %55, %57 : vector<16x16xf32>
    %59 = vector.broadcast %32 : f32 to vector<16x16xf32>
    %60 = arith.addf %58, %59 : vector<16x16xf32>
    %cst = arith.constant 0.000000e+00 : f32
    %61 = vector.broadcast %cst : f32 to vector<16x16xf32>
    %62 = vector.broadcast %4 : f32 to vector<16x16xf32>
    %63 = arith.mulf %41, %62 : vector<16x16xf32>
    %64 = vector.broadcast %5 : f32 to vector<16x16xf32>
    %65 = arith.mulf %43, %64 : vector<16x16xf32>
    %66 = arith.addf %63, %65 : vector<16x16xf32>
    %67 = vector.broadcast %6 : f32 to vector<16x16xf32>
    %68 = arith.mulf %45, %67 : vector<16x16xf32>
    %69 = arith.addf %66, %68 : vector<16x16xf32>
    %70 = vector.broadcast %7 : f32 to vector<16x16xf32>
    %71 = arith.mulf %47, %70 : vector<16x16xf32>
    %72 = arith.addf %69, %71 : vector<16x16xf32>
    %73 = vector.broadcast %33 : f32 to vector<16x16xf32>
    %74 = arith.addf %72, %73 : vector<16x16xf32>
    %75 = arith.cmpf ogt, %74, %60 : vector<16x16xf32>
    %cst_80 = arith.constant 1.000000e+00 : f32
    %76 = vector.broadcast %cst_80 : f32 to vector<16x16xf32>
    %77 = arith.select %75, %76, %61 : vector<16x16xi1>, vector<16x16xf32>
    %78 = arith.maximumf %60, %74 : vector<16x16xf32>
    %79 = vector.broadcast %8 : f32 to vector<16x16xf32>
    %80 = arith.mulf %41, %79 : vector<16x16xf32>
    %81 = vector.broadcast %9 : f32 to vector<16x16xf32>
    %82 = arith.mulf %43, %81 : vector<16x16xf32>
    %83 = arith.addf %80, %82 : vector<16x16xf32>
    %84 = vector.broadcast %10 : f32 to vector<16x16xf32>
    %85 = arith.mulf %45, %84 : vector<16x16xf32>
    %86 = arith.addf %83, %85 : vector<16x16xf32>
    %87 = vector.broadcast %11 : f32 to vector<16x16xf32>
    %88 = arith.mulf %47, %87 : vector<16x16xf32>
    %89 = arith.addf %86, %88 : vector<16x16xf32>
    %90 = vector.broadcast %34 : f32 to vector<16x16xf32>
    %91 = arith.addf %89, %90 : vector<16x16xf32>
    %92 = arith.cmpf ogt, %91, %78 : vector<16x16xf32>
    %cst_81 = arith.constant 2.000000e+00 : f32
    %93 = vector.broadcast %cst_81 : f32 to vector<16x16xf32>
    %94 = arith.select %92, %93, %77 : vector<16x16xi1>, vector<16x16xf32>
    %95 = arith.maximumf %78, %91 : vector<16x16xf32>
    %96 = vector.broadcast %12 : f32 to vector<16x16xf32>
    %97 = arith.mulf %41, %96 : vector<16x16xf32>
    %98 = vector.broadcast %13 : f32 to vector<16x16xf32>
    %99 = arith.mulf %43, %98 : vector<16x16xf32>
    %100 = arith.addf %97, %99 : vector<16x16xf32>
    %101 = vector.broadcast %14 : f32 to vector<16x16xf32>
    %102 = arith.mulf %45, %101 : vector<16x16xf32>
    %103 = arith.addf %100, %102 : vector<16x16xf32>
    %104 = vector.broadcast %15 : f32 to vector<16x16xf32>
    %105 = arith.mulf %47, %104 : vector<16x16xf32>
    %106 = arith.addf %103, %105 : vector<16x16xf32>
    %107 = vector.broadcast %35 : f32 to vector<16x16xf32>
    %108 = arith.addf %106, %107 : vector<16x16xf32>
    %109 = arith.cmpf ogt, %108, %95 : vector<16x16xf32>
    %cst_82 = arith.constant 3.000000e+00 : f32
    %110 = vector.broadcast %cst_82 : f32 to vector<16x16xf32>
    %111 = arith.select %109, %110, %94 : vector<16x16xi1>, vector<16x16xf32>
    %112 = arith.maximumf %95, %108 : vector<16x16xf32>
    %113 = vector.broadcast %16 : f32 to vector<16x16xf32>
    %114 = arith.mulf %41, %113 : vector<16x16xf32>
    %115 = vector.broadcast %17 : f32 to vector<16x16xf32>
    %116 = arith.mulf %43, %115 : vector<16x16xf32>
    %117 = arith.addf %114, %116 : vector<16x16xf32>
    %118 = vector.broadcast %18 : f32 to vector<16x16xf32>
    %119 = arith.mulf %45, %118 : vector<16x16xf32>
    %120 = arith.addf %117, %119 : vector<16x16xf32>
    %121 = vector.broadcast %19 : f32 to vector<16x16xf32>
    %122 = arith.mulf %47, %121 : vector<16x16xf32>
    %123 = arith.addf %120, %122 : vector<16x16xf32>
    %124 = vector.broadcast %36 : f32 to vector<16x16xf32>
    %125 = arith.addf %123, %124 : vector<16x16xf32>
    %126 = arith.cmpf ogt, %125, %112 : vector<16x16xf32>
    %cst_83 = arith.constant 4.000000e+00 : f32
    %127 = vector.broadcast %cst_83 : f32 to vector<16x16xf32>
    %128 = arith.select %126, %127, %111 : vector<16x16xi1>, vector<16x16xf32>
    %129 = arith.maximumf %112, %125 : vector<16x16xf32>
    %130 = vector.broadcast %20 : f32 to vector<16x16xf32>
    %131 = arith.mulf %41, %130 : vector<16x16xf32>
    %132 = vector.broadcast %21 : f32 to vector<16x16xf32>
    %133 = arith.mulf %43, %132 : vector<16x16xf32>
    %134 = arith.addf %131, %133 : vector<16x16xf32>
    %135 = vector.broadcast %22 : f32 to vector<16x16xf32>
    %136 = arith.mulf %45, %135 : vector<16x16xf32>
    %137 = arith.addf %134, %136 : vector<16x16xf32>
    %138 = vector.broadcast %23 : f32 to vector<16x16xf32>
    %139 = arith.mulf %47, %138 : vector<16x16xf32>
    %140 = arith.addf %137, %139 : vector<16x16xf32>
    %141 = vector.broadcast %37 : f32 to vector<16x16xf32>
    %142 = arith.addf %140, %141 : vector<16x16xf32>
    %143 = arith.cmpf ogt, %142, %129 : vector<16x16xf32>
    %cst_84 = arith.constant 5.000000e+00 : f32
    %144 = vector.broadcast %cst_84 : f32 to vector<16x16xf32>
    %145 = arith.select %143, %144, %128 : vector<16x16xi1>, vector<16x16xf32>
    %146 = arith.maximumf %129, %142 : vector<16x16xf32>
    %147 = vector.broadcast %24 : f32 to vector<16x16xf32>
    %148 = arith.mulf %41, %147 : vector<16x16xf32>
    %149 = vector.broadcast %25 : f32 to vector<16x16xf32>
    %150 = arith.mulf %43, %149 : vector<16x16xf32>
    %151 = arith.addf %148, %150 : vector<16x16xf32>
    %152 = vector.broadcast %26 : f32 to vector<16x16xf32>
    %153 = arith.mulf %45, %152 : vector<16x16xf32>
    %154 = arith.addf %151, %153 : vector<16x16xf32>
    %155 = vector.broadcast %27 : f32 to vector<16x16xf32>
    %156 = arith.mulf %47, %155 : vector<16x16xf32>
    %157 = arith.addf %154, %156 : vector<16x16xf32>
    %158 = vector.broadcast %38 : f32 to vector<16x16xf32>
    %159 = arith.addf %157, %158 : vector<16x16xf32>
    %160 = arith.cmpf ogt, %159, %146 : vector<16x16xf32>
    %cst_85 = arith.constant 6.000000e+00 : f32
    %161 = vector.broadcast %cst_85 : f32 to vector<16x16xf32>
    %162 = arith.select %160, %161, %145 : vector<16x16xi1>, vector<16x16xf32>
    %163 = arith.maximumf %146, %159 : vector<16x16xf32>
    %164 = vector.broadcast %28 : f32 to vector<16x16xf32>
    %165 = arith.mulf %41, %164 : vector<16x16xf32>
    %166 = vector.broadcast %29 : f32 to vector<16x16xf32>
    %167 = arith.mulf %43, %166 : vector<16x16xf32>
    %168 = arith.addf %165, %167 : vector<16x16xf32>
    %169 = vector.broadcast %30 : f32 to vector<16x16xf32>
    %170 = arith.mulf %45, %169 : vector<16x16xf32>
    %171 = arith.addf %168, %170 : vector<16x16xf32>
    %172 = vector.broadcast %31 : f32 to vector<16x16xf32>
    %173 = arith.mulf %47, %172 : vector<16x16xf32>
    %174 = arith.addf %171, %173 : vector<16x16xf32>
    %175 = vector.broadcast %39 : f32 to vector<16x16xf32>
    %176 = arith.addf %174, %175 : vector<16x16xf32>
    %177 = arith.cmpf ogt, %176, %163 : vector<16x16xf32>
    %cst_86 = arith.constant 7.000000e+00 : f32
    %178 = vector.broadcast %cst_86 : f32 to vector<16x16xf32>
    %179 = arith.select %177, %178, %162 : vector<16x16xi1>, vector<16x16xf32>
    %180 = arith.truncf %179 : vector<16x16xf32> to vector<16x16xbf16>
    %c0_87 = arith.constant 0 : index
    %c0_88 = arith.constant 0 : index
    %181 = vector.load %arg8[%c0_87, %c0_88] : memref<16x16xbf16, #tpu.memory_space<vmem>>, vector<16x16xbf16>
    tpu.vector_store %arg8[%c0_87, %c0_88], %180 {strides = array<i32>} : memref<16x16xbf16, #tpu.memory_space<vmem>>, vector<16x16xbf16>,
    %c0_89 = arith.constant 0 : index
    %c0_90 = arith.constant 0 : index
    %182 = vector.load %arg5[%c0_89, %c0_90] : memref<32x16xbf16, #tpu.memory_space<vmem>>, vector<32x16xbf16>
    %c0_91 = arith.constant 0 : index
    %c0_92 = arith.constant 0 : index
    %183 = vector.load %arg8[%c0_91, %c0_92] : memref<16x16xbf16, #tpu.memory_space<vmem>>, vector<16x16xbf16>
    %cst_93 = arith.constant dense<0.000000e+00> : vector<32x16xf32>
    %184 = tpu.matmul %182, %183, %cst_93 {dimension_numbers = #tpu.dot_dimension_numbers<[1], [0], [0], [1], [0, 0, 1, 1], [], []>} : vector<32x16xbf16>, vector<16x16xbf16>, vector<32x16xf32> -> vector<32x16xf32>
    %185 = arith.truncf %184 : vector<32x16xf32> to vector<32x16xbf16>
    %c0_94 = arith.constant 0 : index
    %c0_95 = arith.constant 0 : index
    %186 = vector.load %arg6[%c0_94, %c0_95] : memref<16x32xbf16, #tpu.memory_space<vmem>>, vector<16x32xbf16>
    %cst_96 = arith.constant dense<0.000000e+00> : vector<32x32xf32>
    %187 = tpu.matmul %185, %186, %cst_96 {dimension_numbers = #tpu.dot_dimension_numbers<[1], [0], [0], [1], [0, 0, 1, 1], [], []>} : vector<32x16xbf16>, vector<16x32xbf16>, vector<32x32xf32> -> vector<32x32xf32>
    %188 = arith.fptosi %187 : vector<32x32xf32> to vector<32x32xi32>
    %c0_97 = arith.constant 0 : index
    %c0_98 = arith.constant 0 : index
    %c0_99 = arith.constant 0 : index
    %189 = vector.load %arg7[%c0_97, %c0_98, %c0_99] : memref<2x32x32xi32, #tpu.memory_space<vmem>>, vector<1x32x32xi32>
    %190 = vector.shape_cast %189 : vector<1x32x32xi32> to vector<32x32xi32>
    %191 = vector.shape_cast %188 : vector<32x32xi32> to vector<1x32x32xi32>
    tpu.vector_store %arg7[%c0_97, %c0_98, %c0_99], %191 {strides = array<i32>} : memref<2x32x32xi32, #tpu.memory_space<vmem>>, vector<1x32x32xi32>,
    %c1_100 = arith.constant 1 : index
    %c0_101 = arith.constant 0 : index
    %c0_102 = arith.constant 0 : index
    %c0_103 = arith.constant 0 : index
    %192 = vector.load %arg2[%c1_100, %c0_101, %c0_102, %c0_103] : memref<2x4x16x16xf32, #tpu.memory_space<vmem>>, vector<1x1x16x16xf32>
    %193 = vector.shape_cast %192 : vector<1x1x16x16xf32> to vector<16x16xf32>
    %c1_104 = arith.constant 1 : index
    %c1_105 = arith.constant 1 : index
    %c0_106 = arith.constant 0 : index
    %c0_107 = arith.constant 0 : index
    %194 = vector.load %arg2[%c1_104, %c1_105, %c0_106, %c0_107] : memref<2x4x16x16xf32, #tpu.memory_space<vmem>>, vector<1x1x16x16xf32>
    %195 = vector.shape_cast %194 : vector<1x1x16x16xf32> to vector<16x16xf32>
    %c1_108 = arith.constant 1 : index
    %c2_109 = arith.constant 2 : index
    %c0_110 = arith.constant 0 : index
    %c0_111 = arith.constant 0 : index
    %196 = vector.load %arg2[%c1_108, %c2_109, %c0_110, %c0_111] : memref<2x4x16x16xf32, #tpu.memory_space<vmem>>, vector<1x1x16x16xf32>
    %197 = vector.shape_cast %196 : vector<1x1x16x16xf32> to vector<16x16xf32>
    %c1_112 = arith.constant 1 : index
    %c3_113 = arith.constant 3 : index
    %c0_114 = arith.constant 0 : index
    %c0_115 = arith.constant 0 : index
    %198 = vector.load %arg2[%c1_112, %c3_113, %c0_114, %c0_115] : memref<2x4x16x16xf32, #tpu.memory_space<vmem>>, vector<1x1x16x16xf32>
    %199 = vector.shape_cast %198 : vector<1x1x16x16xf32> to vector<16x16xf32>
    %200 = vector.broadcast %0 : f32 to vector<16x16xf32>
    %201 = arith.mulf %193, %200 : vector<16x16xf32>
    %202 = vector.broadcast %1 : f32 to vector<16x16xf32>
    %203 = arith.mulf %195, %202 : vector<16x16xf32>
    %204 = arith.addf %201, %203 : vector<16x16xf32>
    %205 = vector.broadcast %2 : f32 to vector<16x16xf32>
    %206 = arith.mulf %197, %205 : vector<16x16xf32>
    %207 = arith.addf %204, %206 : vector<16x16xf32>
    %208 = vector.broadcast %3 : f32 to vector<16x16xf32>
    %209 = arith.mulf %199, %208 : vector<16x16xf32>
    %210 = arith.addf %207, %209 : vector<16x16xf32>
    %211 = vector.broadcast %32 : f32 to vector<16x16xf32>
    %212 = arith.addf %210, %211 : vector<16x16xf32>
    %cst_116 = arith.constant 0.000000e+00 : f32
    %213 = vector.broadcast %cst_116 : f32 to vector<16x16xf32>
    %214 = vector.broadcast %4 : f32 to vector<16x16xf32>
    %215 = arith.mulf %193, %214 : vector<16x16xf32>
    %216 = vector.broadcast %5 : f32 to vector<16x16xf32>
    %217 = arith.mulf %195, %216 : vector<16x16xf32>
    %218 = arith.addf %215, %217 : vector<16x16xf32>
    %219 = vector.broadcast %6 : f32 to vector<16x16xf32>
    %220 = arith.mulf %197, %219 : vector<16x16xf32>
    %221 = arith.addf %218, %220 : vector<16x16xf32>
    %222 = vector.broadcast %7 : f32 to vector<16x16xf32>
    %223 = arith.mulf %199, %222 : vector<16x16xf32>
    %224 = arith.addf %221, %223 : vector<16x16xf32>
    %225 = vector.broadcast %33 : f32 to vector<16x16xf32>
    %226 = arith.addf %224, %225 : vector<16x16xf32>
    %227 = arith.cmpf ogt, %226, %212 : vector<16x16xf32>
    %cst_117 = arith.constant 1.000000e+00 : f32
    %228 = vector.broadcast %cst_117 : f32 to vector<16x16xf32>
    %229 = arith.select %227, %228, %213 : vector<16x16xi1>, vector<16x16xf32>
    %230 = arith.maximumf %212, %226 : vector<16x16xf32>
    %231 = vector.broadcast %8 : f32 to vector<16x16xf32>
    %232 = arith.mulf %193, %231 : vector<16x16xf32>
    %233 = vector.broadcast %9 : f32 to vector<16x16xf32>
    %234 = arith.mulf %195, %233 : vector<16x16xf32>
    %235 = arith.addf %232, %234 : vector<16x16xf32>
    %236 = vector.broadcast %10 : f32 to vector<16x16xf32>
    %237 = arith.mulf %197, %236 : vector<16x16xf32>
    %238 = arith.addf %235, %237 : vector<16x16xf32>
    %239 = vector.broadcast %11 : f32 to vector<16x16xf32>
    %240 = arith.mulf %199, %239 : vector<16x16xf32>
    %241 = arith.addf %238, %240 : vector<16x16xf32>
    %242 = vector.broadcast %34 : f32 to vector<16x16xf32>
    %243 = arith.addf %241, %242 : vector<16x16xf32>
    %244 = arith.cmpf ogt, %243, %230 : vector<16x16xf32>
    %cst_118 = arith.constant 2.000000e+00 : f32
    %245 = vector.broadcast %cst_118 : f32 to vector<16x16xf32>
    %246 = arith.select %244, %245, %229 : vector<16x16xi1>, vector<16x16xf32>
    %247 = arith.maximumf %230, %243 : vector<16x16xf32>
    %248 = vector.broadcast %12 : f32 to vector<16x16xf32>
    %249 = arith.mulf %193, %248 : vector<16x16xf32>
    %250 = vector.broadcast %13 : f32 to vector<16x16xf32>
    %251 = arith.mulf %195, %250 : vector<16x16xf32>
    %252 = arith.addf %249, %251 : vector<16x16xf32>
    %253 = vector.broadcast %14 : f32 to vector<16x16xf32>
    %254 = arith.mulf %197, %253 : vector<16x16xf32>
    %255 = arith.addf %252, %254 : vector<16x16xf32>
    %256 = vector.broadcast %15 : f32 to vector<16x16xf32>
    %257 = arith.mulf %199, %256 : vector<16x16xf32>
    %258 = arith.addf %255, %257 : vector<16x16xf32>
    %259 = vector.broadcast %35 : f32 to vector<16x16xf32>
    %260 = arith.addf %258, %259 : vector<16x16xf32>
    %261 = arith.cmpf ogt, %260, %247 : vector<16x16xf32>
    %cst_119 = arith.constant 3.000000e+00 : f32
    %262 = vector.broadcast %cst_119 : f32 to vector<16x16xf32>
    %263 = arith.select %261, %262, %246 : vector<16x16xi1>, vector<16x16xf32>
    %264 = arith.maximumf %247, %260 : vector<16x16xf32>
    %265 = vector.broadcast %16 : f32 to vector<16x16xf32>
    %266 = arith.mulf %193, %265 : vector<16x16xf32>
    %267 = vector.broadcast %17 : f32 to vector<16x16xf32>
    %268 = arith.mulf %195, %267 : vector<16x16xf32>
    %269 = arith.addf %266, %268 : vector<16x16xf32>
    %270 = vector.broadcast %18 : f32 to vector<16x16xf32>
    %271 = arith.mulf %197, %270 : vector<16x16xf32>
    %272 = arith.addf %269, %271 : vector<16x16xf32>
    %273 = vector.broadcast %19 : f32 to vector<16x16xf32>
    %274 = arith.mulf %199, %273 : vector<16x16xf32>
    %275 = arith.addf %272, %274 : vector<16x16xf32>
    %276 = vector.broadcast %36 : f32 to vector<16x16xf32>
    %277 = arith.addf %275, %276 : vector<16x16xf32>
    %278 = arith.cmpf ogt, %277, %264 : vector<16x16xf32>
    %cst_120 = arith.constant 4.000000e+00 : f32
    %279 = vector.broadcast %cst_120 : f32 to vector<16x16xf32>
    %280 = arith.select %278, %279, %263 : vector<16x16xi1>, vector<16x16xf32>
    %281 = arith.maximumf %264, %277 : vector<16x16xf32>
    %282 = vector.broadcast %20 : f32 to vector<16x16xf32>
    %283 = arith.mulf %193, %282 : vector<16x16xf32>
    %284 = vector.broadcast %21 : f32 to vector<16x16xf32>
    %285 = arith.mulf %195, %284 : vector<16x16xf32>
    %286 = arith.addf %283, %285 : vector<16x16xf32>
    %287 = vector.broadcast %22 : f32 to vector<16x16xf32>
    %288 = arith.mulf %197, %287 : vector<16x16xf32>
    %289 = arith.addf %286, %288 : vector<16x16xf32>
    %290 = vector.broadcast %23 : f32 to vector<16x16xf32>
    %291 = arith.mulf %199, %290 : vector<16x16xf32>
    %292 = arith.addf %289, %291 : vector<16x16xf32>
    %293 = vector.broadcast %37 : f32 to vector<16x16xf32>
    %294 = arith.addf %292, %293 : vector<16x16xf32>
    %295 = arith.cmpf ogt, %294, %281 : vector<16x16xf32>
    %cst_121 = arith.constant 5.000000e+00 : f32
    %296 = vector.broadcast %cst_121 : f32 to vector<16x16xf32>
    %297 = arith.select %295, %296, %280 : vector<16x16xi1>, vector<16x16xf32>
    %298 = arith.maximumf %281, %294 : vector<16x16xf32>
    %299 = vector.broadcast %24 : f32 to vector<16x16xf32>
    %300 = arith.mulf %193, %299 : vector<16x16xf32>
    %301 = vector.broadcast %25 : f32 to vector<16x16xf32>
    %302 = arith.mulf %195, %301 : vector<16x16xf32>
    %303 = arith.addf %300, %302 : vector<16x16xf32>
    %304 = vector.broadcast %26 : f32 to vector<16x16xf32>
    %305 = arith.mulf %197, %304 : vector<16x16xf32>
    %306 = arith.addf %303, %305 : vector<16x16xf32>
    %307 = vector.broadcast %27 : f32 to vector<16x16xf32>
    %308 = arith.mulf %199, %307 : vector<16x16xf32>
    %309 = arith.addf %306, %308 : vector<16x16xf32>
    %310 = vector.broadcast %38 : f32 to vector<16x16xf32>
    %311 = arith.addf %309, %310 : vector<16x16xf32>
    %312 = arith.cmpf ogt, %311, %298 : vector<16x16xf32>
    %cst_122 = arith.constant 6.000000e+00 : f32
    %313 = vector.broadcast %cst_122 : f32 to vector<16x16xf32>
    %314 = arith.select %312, %313, %297 : vector<16x16xi1>, vector<16x16xf32>
    %315 = arith.maximumf %298, %311 : vector<16x16xf32>
    %316 = vector.broadcast %28 : f32 to vector<16x16xf32>
    %317 = arith.mulf %193, %316 : vector<16x16xf32>
    %318 = vector.broadcast %29 : f32 to vector<16x16xf32>
    %319 = arith.mulf %195, %318 : vector<16x16xf32>
    %320 = arith.addf %317, %319 : vector<16x16xf32>
    %321 = vector.broadcast %30 : f32 to vector<16x16xf32>
    %322 = arith.mulf %197, %321 : vector<16x16xf32>
    %323 = arith.addf %320, %322 : vector<16x16xf32>
    %324 = vector.broadcast %31 : f32 to vector<16x16xf32>
    %325 = arith.mulf %199, %324 : vector<16x16xf32>
    %326 = arith.addf %323, %325 : vector<16x16xf32>
    %327 = vector.broadcast %39 : f32 to vector<16x16xf32>
    %328 = arith.addf %326, %327 : vector<16x16xf32>
    %329 = arith.cmpf ogt, %328, %315 : vector<16x16xf32>
    %cst_123 = arith.constant 7.000000e+00 : f32
    %330 = vector.broadcast %cst_123 : f32 to vector<16x16xf32>
    %331 = arith.select %329, %330, %314 : vector<16x16xi1>, vector<16x16xf32>
    %332 = arith.truncf %331 : vector<16x16xf32> to vector<16x16xbf16>
    %c0_124 = arith.constant 0 : index
    %c0_125 = arith.constant 0 : index
    %333 = vector.load %arg8[%c0_124, %c0_125] : memref<16x16xbf16, #tpu.memory_space<vmem>>, vector<16x16xbf16>
    tpu.vector_store %arg8[%c0_124, %c0_125], %332 {strides = array<i32>} : memref<16x16xbf16, #tpu.memory_space<vmem>>, vector<16x16xbf16>,
    %c0_126 = arith.constant 0 : index
    %c0_127 = arith.constant 0 : index
    %334 = vector.load %arg5[%c0_126, %c0_127] : memref<32x16xbf16, #tpu.memory_space<vmem>>, vector<32x16xbf16>
    %c0_128 = arith.constant 0 : index
    %c0_129 = arith.constant 0 : index
    %335 = vector.load %arg8[%c0_128, %c0_129] : memref<16x16xbf16, #tpu.memory_space<vmem>>, vector<16x16xbf16>
    %cst_130 = arith.constant dense<0.000000e+00> : vector<32x16xf32>
    %336 = tpu.matmul %334, %335, %cst_130 {dimension_numbers = #tpu.dot_dimension_numbers<[1], [0], [0], [1], [0, 0, 1, 1], [], []>} : vector<32x16xbf16>, vector<16x16xbf16>, vector<32x16xf32> -> vector<32x16xf32>
    %337 = arith.truncf %336 : vector<32x16xf32> to vector<32x16xbf16>
    %c0_131 = arith.constant 0 : index
    %c0_132 = arith.constant 0 : index
    %338 = vector.load %arg6[%c0_131, %c0_132] : memref<16x32xbf16, #tpu.memory_space<vmem>>, vector<16x32xbf16>
    %cst_133 = arith.constant dense<0.000000e+00> : vector<32x32xf32>
    %339 = tpu.matmul %337, %338, %cst_133 {dimension_numbers = #tpu.dot_dimension_numbers<[1], [0], [0], [1], [0, 0, 1, 1], [], []>} : vector<32x16xbf16>, vector<16x32xbf16>, vector<32x32xf32> -> vector<32x32xf32>
    %340 = arith.fptosi %339 : vector<32x32xf32> to vector<32x32xi32>
    %c1_134 = arith.constant 1 : index
    %c0_135 = arith.constant 0 : index
    %c0_136 = arith.constant 0 : index
    %341 = vector.load %arg7[%c1_134, %c0_135, %c0_136] : memref<2x32x32xi32, #tpu.memory_space<vmem>>, vector<1x32x32xi32>
    %342 = vector.shape_cast %341 : vector<1x32x32xi32> to vector<32x32xi32>
    %343 = vector.shape_cast %340 : vector<32x32xi32> to vector<1x32x32xi32>
    tpu.vector_store %arg7[%c1_134, %c0_135, %c0_136], %343 {strides = array<i32>} : memref<2x32x32xi32, #tpu.memory_space<vmem>>, vector<1x32x32xi32>,
    return
  }
  func.func @transform_0(%arg0: i32, %arg1: i32) -> (i32, i32, i32, i32) {
    %c0_i32 = arith.constant 0 : i32
    %c0_i32_0 = arith.constant 0 : i32
    %c0_i32_1 = arith.constant 0 : i32
    return %arg0, %c0_i32, %arg1, %c0_i32_0 : i32, i32, i32, i32
  }
  func.func @transform_1(%arg0: i32, %arg1: i32) -> (i32, i32) {
    %c0_i32 = arith.constant 0 : i32
    %c0_i32_0 = arith.constant 0 : i32
    %c0_i32_1 = arith.constant 0 : i32
    return %c0_i32, %c0_i32_0 : i32, i32
  }
  func.func @transform_2(%arg0: i32, %arg1: i32) -> i32 {
    %c0_i32 = arith.constant 0 : i32
    %c0_i32_0 = arith.constant 0 : i32
    return %c0_i32 : i32
  }
  func.func @transform_3(%arg0: i32, %arg1: i32) -> (i32, i32) {
    %c0_i32 = arith.constant 0 : i32
    return %arg1, %arg1 : i32, i32
  }
  func.func @transform_4(%arg0: i32, %arg1: i32) -> (i32, i32) {
    %c0_i32 = arith.constant 0 : i32
    %c0_i32_0 = arith.constant 0 : i32
    %c0_i32_1 = arith.constant 0 : i32
    return %c0_i32, %c0_i32_0 : i32, i32
  }
  func.func @transform_5(%arg0: i32, %arg1: i32) -> (i32, i32, i32) {
    %c0_i32 = arith.constant 0 : i32
    %c0_i32_0 = arith.constant 0 : i32
    return %arg0, %arg1, %c0_i32 : i32, i32, i32
  }
}

</mosaic_0001>

<llo_original>
// kernel: onnx_net_forward.1
$region0: #{onnx_net_forward.1}
  #allocation0 [shape = 'u32[]', space=smem, size = 0x4, offset = 0x4, fixed_abs, tag = 'smem constant byte address 0x4 - core index']
  #allocation1 [shape = 'u32[144,128]{1,0:T(1,128)}', space=vmem, size = 0x12000, scoped, tag = 'internal scratch']
  #allocation2 [shape = 'bf16[16,16]{1,0:T(8,128)(2,1)}', space=vmem, size = 0x1000, scoped, tag = 'scratch operand']
  %s0 = inlined_call_operand.hbm [shape: f32[2,4,16,16], index: 0, kind: input, shape index: {}]
  %s1 = inlined_call_operand.vmem [shape: f32[8,4], index: 1, kind: input, shape index: {}]
  %s2 = inlined_call_operand.vmem [shape: f32[8], index: 2, kind: input, shape index: {}]
  %s3 = inlined_call_operand.vmem [shape: bf16[32,16], index: 3, kind: input, shape index: {}]
  %s4 = inlined_call_operand.vmem [shape: bf16[16,32], index: 4, kind: input, shape index: {}]
  %s5 = inlined_call_operand.hbm [shape: s32[2,32,32], index: 5, kind: output, shape index: {}]
  %s6 = sld [smem:[#allocation0]]
  $region42: #{onnx_net_forward.1} parent=0
    _
  %s8 = ssub.s32 1, %s6
  %s9 = scalar_select 0, %s8, %s6
  $region1: #{onnx_net_forward.1} parent=0
    #allocation3 [shape = 'u8[65536]{0}', space=vmem, size = 0x10000, scoped, tag = 'input window, operand 0, single buffered']
    #allocation4 [shape = 's32[1]{0}', space=sflag, size = 0x4, scoped, tag = 'scoped memory for onnx_net_forward.1']
    #allocation5 [shape = 's32[1]{0}', space=sflag, size = 0x4, scoped, tag = 'scoped memory for onnx_net_forward.1']
    #allocation6 [shape = 's32[1]{0}', space=sflag, size = 0x4, scoped, tag = 'scoped memory for onnx_net_forward.1']
    #allocation7 [shape = 'u8[4096]{0}', space=smem, size = 0x1000, scoped, tag = 'input window, operand 1, single buffered']
    #allocation8 [shape = 'u8[512]{0}', space=smem, size = 0x200, scoped, tag = 'input window, operand 2, single buffered']
    #allocation9 [shape = 's32[1]{0}', space=sflag, size = 0x4, scoped, tag = 'scoped memory for onnx_net_forward.1']
    #allocation10 [shape = 'u8[32768]{0}', space=vmem, size = 0x8000, scoped, tag = 'output window, operand 0, single buffered']
    %10 = vsyncpa [#allocation4], 0
    %11 = vsyncpa [#allocation6], 0
    %12 = vsyncpa [#allocation9], 0
    %13 = vsyncpa [#allocation5], 0
    // Predicated region
    $region2: #{onnx_net_forward.1} parent=1 // pred_check
      _
    $region3: #{onnx_net_forward.1} parent=1 // pred_check_branch
      %15 = sbr.rel (0) target = $region5
    $region4: #{onnx_net_forward.1} parent=1 // pred_region
      %s17 = ssub.s32 2048, 2048
      %18 = vsyncadd [#allocation4], %s17
      %s19 = sshll.u32 [#allocation3], 4
      %s20 = int_to_ptr.vmem [resolvable:$true] %s19
      %25 = dma.hbm_to_vmem [thread:$0]  %s0, 2048, %s20, [#allocation4], 128, 128, 8
    $region5: #{onnx_net_forward.1} parent=1 // pred_fallthru
      _
    // Predicated region
    $region6: #{onnx_net_forward.1} parent=1 // pred_check
      _
    $region7: #{onnx_net_forward.1} parent=1 // pred_check_branch
      %27 = sbr.rel (0) target = $region9
    $region8: #{onnx_net_forward.1} parent=1 // pred_region
      %s29 = ssub.s32 128, 128
      %30 = vsyncadd [#allocation6], %s29
      %s32 = sshll.u32 %s1, 4
      %s33 = int_to_ptr.vmem [resolvable:$true] %s32
      %35 = dma.vmem_to_smem %s33, 128, [#allocation7], [#allocation6]
    $region9: #{onnx_net_forward.1} parent=1 // pred_fallthru
      _
    // Predicated region
    $region10: #{onnx_net_forward.1} parent=1 // pred_check
      _
    $region11: #{onnx_net_forward.1} parent=1 // pred_check_branch
      %37 = sbr.rel (0) target = $region13
    $region12: #{onnx_net_forward.1} parent=1 // pred_region
      %s39 = ssub.s32 16, 16
      %40 = vsyncadd [#allocation9], %s39
      %s42 = sshll.u32 %s2, 4
      %s43 = int_to_ptr.vmem [resolvable:$true] %s42
      %45 = dma.vmem_to_smem %s43, 16, [#allocation8], [#allocation9]
    $region13: #{onnx_net_forward.1} parent=1 // pred_fallthru
      _
    // Predicated region
    $region14: #{onnx_net_forward.1} parent=1 // pred_check
      _
    $region15: #{onnx_net_forward.1} parent=1 // pred_check_branch
      %47 = sbr.rel (0) target = $region17
    $region16: #{onnx_net_forward.1} parent=1 // pred_region
      _
    $region17: #{onnx_net_forward.1} parent=1 // pred_fallthru
      _
    // Predicated region
    $region18: #{onnx_net_forward.1} parent=1 // pred_check
      _
    $region19: #{onnx_net_forward.1} parent=1 // pred_check_branch
      %49 = sbr.rel (0) target = $region21
    $region20: #{onnx_net_forward.1} parent=1 // pred_region
      _
    $region21: #{onnx_net_forward.1} parent=1 // pred_fallthru
      _
    // Predicated region
    $region22: #{onnx_net_forward.1} parent=1 // pred_check
      _
    $region23: #{onnx_net_forward.1} parent=1 // pred_check_branch
      %51 = sbr.rel (0) target = $region25
    $region24: #{onnx_net_forward.1} parent=1 // pred_region
      %52 = dma.done [#allocation4], 2048
    $region25: #{onnx_net_forward.1} parent=1 // pred_fallthru
      _
    // Predicated region
    $region26: #{onnx_net_forward.1} parent=1 // pred_check
      _
    $region27: #{onnx_net_forward.1} parent=1 // pred_check_branch
      %54 = sbr.rel (0) target = $region29
    $region28: #{onnx_net_forward.1} parent=1 // pred_region
      %55 = dma.done [#allocation6], 128
    $region29: #{onnx_net_forward.1} parent=1 // pred_fallthru
      _
    // Predicated region
    $region30: #{onnx_net_forward.1} parent=1 // pred_check
      _
    $region31: #{onnx_net_forward.1} parent=1 // pred_check_branch
      %57 = sbr.rel (0) target = $region33
    $region32: #{onnx_net_forward.1} parent=1 // pred_region
      %58 = dma.done [#allocation9], 16
    $region33: #{onnx_net_forward.1} parent=1 // pred_fallthru
      _
    %59 = sfence
    %s61 = sld [smem:[#allocation7]]
    %s62 = sld [smem:[#allocation7 + $0x1]]
    %s63 = sld [smem:[#allocation7 + $0x2]]
    %s64 = sld [smem:[#allocation7 + $0x3]]
    %s65 = sld [smem:[#allocation7 + $0x80]]
    %s66 = sld [smem:[#allocation7 + $0x81]]
    %s67 = sld [smem:[#allocation7 + $0x82]]
    %s68 = sld [smem:[#allocation7 + $0x83]]
    %s69 = sld [smem:[#allocation7 + $0x100]]
    %s70 = sld [smem:[#allocation7 + $0x101]]
    %s71 = sld [smem:[#allocation7 + $0x102]]
    %s72 = sld [smem:[#allocation7 + $0x103]]
    %s73 = sld [smem:[#allocation7 + $0x180]]
    %s74 = sld [smem:[#allocation7 + $0x181]]
    %s75 = sld [smem:[#allocation7 + $0x182]]
    %s76 = sld [smem:[#allocation7 + $0x183]]
    %s77 = sld [smem:[#allocation7 + $0x200]]
    %s78 = sld [smem:[#allocation7 + $0x201]]
    %s79 = sld [smem:[#allocation7 + $0x202]]
    %s80 = sld [smem:[#allocation7 + $0x203]]
    %s81 = sld [smem:[#allocation7 + $0x280]]
    %s82 = sld [smem:[#allocation7 + $0x281]]
    %s83 = sld [smem:[#allocation7 + $0x282]]
    %s84 = sld [smem:[#allocation7 + $0x283]]
    %s85 = sld [smem:[#allocation7 + $0x300]]
    %s86 = sld [smem:[#allocation7 + $0x301]]
    %s87 = sld [smem:[#allocation7 + $0x302]]
    %s88 = sld [smem:[#allocation7 + $0x303]]
    %s89 = sld [smem:[#allocation7 + $0x380]]
    %s90 = sld [smem:[#allocation7 + $0x381]]
    %s91 = sld [smem:[#allocation7 + $0x382]]
    %s92 = sld [smem:[#allocation7 + $0x383]]
    %s93 = sld [smem:[#allocation8]]
    %s94 = sld [smem:[#allocation8 + $0x1]]
    %s95 = sld [smem:[#allocation8 + $0x2]]
    %s96 = sld [smem:[#allocation8 + $0x3]]
    %s97 = sld [smem:[#allocation8 + $0x4]]
    %s98 = sld [smem:[#allocation8 + $0x5]]
    %s99 = sld [smem:[#allocation8 + $0x6]]
    %s100 = sld [smem:[#allocation8 + $0x7]]
    %v101 = vld [vmem:[#allocation3] sm:$0xff]
    %v102 = vld [vmem:[#allocation3 + $0x8] sm:$0xff]
    %s103 = scalar_lea.vmem [#allocation3], 16
    %v104 = vld [vmem:[%s103] sm:$0xff]
    %v105 = vld [vmem:[%s103 + $0x8] sm:$0xff]
    %s106 = scalar_lea.vmem [#allocation3], 32
    %v107 = vld [vmem:[%s106] sm:$0xff]
    %v108 = vld [vmem:[%s106 + $0x8] sm:$0xff]
    %s109 = scalar_lea.vmem [#allocation3], 48
    %v110 = vld [vmem:[%s109] sm:$0xff]
    %v111 = vld [vmem:[%s109 + $0x8] sm:$0xff]
    %v112 = vstv %s61
    %v113 = vmul.f32 %v101, %v112
    %v114 = vmul.f32 %v102, %v112
    %v115 = vstv %s62
    %v116 = vmul.f32 %v104, %v115
    %v117 = vmul.f32 %v105, %v115
    %v118 = vadd.f32 %v113, %v116
    %v119 = vadd.f32 %v114, %v117
    %v120 = vstv %s63
    %v121 = vmul.f32 %v107, %v120
    %v122 = vmul.f32 %v108, %v120
    %v123 = vadd.f32 %v118, %v121
    %v124 = vadd.f32 %v119, %v122
    %v125 = vstv %s64
    %v126 = vmul.f32 %v110, %v125
    %v127 = vmul.f32 %v111, %v125
    %v128 = vadd.f32 %v123, %v126
    %v129 = vadd.f32 %v124, %v127
    %v130 = vstv %s93
    %v131 = vadd.f32 %v128, %v130
    %v132 = vadd.f32 %v129, %v130
    %v133 = vstv %s65
    %v134 = vmul.f32 %v101, %v133
    %v135 = vmul.f32 %v102, %v133
    %v136 = vstv %s66
    %v137 = vmul.f32 %v104, %v136
    %v138 = vmul.f32 %v105, %v136
    %v139 = vadd.f32 %v134, %v137
    %v140 = vadd.f32 %v135, %v138
    %v141 = vstv %s67
    %v142 = vmul.f32 %v107, %v141
    %v143 = vmul.f32 %v108, %v141
    %v144 = vadd.f32 %v139, %v142
    %v145 = vadd.f32 %v140, %v143
    %v146 = vstv %s68
    %v147 = vmul.f32 %v110, %v146
    %v148 = vmul.f32 %v111, %v146
    %v149 = vadd.f32 %v144, %v147
    %v150 = vadd.f32 %v145, %v148
    %v151 = vstv %s94
    %v152 = vadd.f32 %v149, %v151
    %v153 = vadd.f32 %v150, %v151
    %vm154 = vcmp.gt.f32.partialorder %v152, %v131
    %vm155 = vcmp.gt.f32.partialorder %v153, %v132
    %v156 = vsel %vm154, 1.0, 0.0
    %v157 = vsel %vm155, 1.0, 0.0
    %v158 = vmax.f32 %v131, %v152
    %v159 = vmax.f32 %v132, %v153
    %v160 = vstv %s69
    %v161 = vmul.f32 %v101, %v160
    %v162 = vmul.f32 %v102, %v160
    %v163 = vstv %s70
    %v164 = vmul.f32 %v104, %v163
    %v165 = vmul.f32 %v105, %v163
    %v166 = vadd.f32 %v161, %v164
    %v167 = vadd.f32 %v162, %v165
    %v168 = vstv %s71
    %v169 = vmul.f32 %v107, %v168
    %v170 = vmul.f32 %v108, %v168
    %v171 = vadd.f32 %v166, %v169
    %v172 = vadd.f32 %v167, %v170
    %v173 = vstv %s72
    %v174 = vmul.f32 %v110, %v173
    %v175 = vmul.f32 %v111, %v173
    %v176 = vadd.f32 %v171, %v174
    %v177 = vadd.f32 %v172, %v175
    %v178 = vstv %s95
    %v179 = vadd.f32 %v176, %v178
    %v180 = vadd.f32 %v177, %v178
    %vm181 = vcmp.gt.f32.partialorder %v179, %v158
    %vm182 = vcmp.gt.f32.partialorder %v180, %v159
    %v183 = vsel %vm181, 2.0, %v156
    %v184 = vsel %vm182, 2.0, %v157
    %v185 = vmax.f32 %v158, %v179
    %v186 = vmax.f32 %v159, %v180
    %v187 = vstv %s73
    %v188 = vmul.f32 %v101, %v187
    %v189 = vmul.f32 %v102, %v187
    %v190 = vstv %s74
    %v191 = vmul.f32 %v104, %v190
    %v192 = vmul.f32 %v105, %v190
    %v193 = vadd.f32 %v188, %v191
    %v194 = vadd.f32 %v189, %v192
    %v195 = vstv %s75
    %v196 = vmul.f32 %v107, %v195
    %v197 = vmul.f32 %v108, %v195
    %v198 = vadd.f32 %v193, %v196
    %v199 = vadd.f32 %v194, %v197
    %v200 = vstv %s76
    %v201 = vmul.f32 %v110, %v200
    %v202 = vmul.f32 %v111, %v200
    %v203 = vadd.f32 %v198, %v201
    %v204 = vadd.f32 %v199, %v202
    %v205 = vstv %s96
    %v206 = vadd.f32 %v203, %v205
    %v207 = vadd.f32 %v204, %v205
    %vm208 = vcmp.gt.f32.partialorder %v206, %v185
    %vm209 = vcmp.gt.f32.partialorder %v207, %v186
    %v210 = vsel %vm208, 3.0, %v183
    %v211 = vsel %vm209, 3.0, %v184
    %v212 = vmax.f32 %v185, %v206
    %v213 = vmax.f32 %v186, %v207
    %v214 = vstv %s77
    %v215 = vmul.f32 %v101, %v214
    %v216 = vmul.f32 %v102, %v214
    %v217 = vstv %s78
    %v218 = vmul.f32 %v104, %v217
    %v219 = vmul.f32 %v105, %v217
    %v220 = vadd.f32 %v215, %v218
    %v221 = vadd.f32 %v216, %v219
    %v222 = vstv %s79
    %v223 = vmul.f32 %v107, %v222
    %v224 = vmul.f32 %v108, %v222
    %v225 = vadd.f32 %v220, %v223
    %v226 = vadd.f32 %v221, %v224
    %v227 = vstv %s80
    %v228 = vmul.f32 %v110, %v227
    %v229 = vmul.f32 %v111, %v227
    %v230 = vadd.f32 %v225, %v228
    %v231 = vadd.f32 %v226, %v229
    %v232 = vstv %s97
    %v233 = vadd.f32 %v230, %v232
    %v234 = vadd.f32 %v231, %v232
    %vm235 = vcmp.gt.f32.partialorder %v233, %v212
    %vm236 = vcmp.gt.f32.partialorder %v234, %v213
    %v237 = vsel %vm235, 4.0, %v210
    %v238 = vsel %vm236, 4.0, %v211
    %v239 = vmax.f32 %v212, %v233
    %v240 = vmax.f32 %v213, %v234
    %v241 = vstv %s81
    %v242 = vmul.f32 %v101, %v241
    %v243 = vmul.f32 %v102, %v241
    %v244 = vstv %s82
    %v245 = vmul.f32 %v104, %v244
    %v246 = vmul.f32 %v105, %v244
    %v247 = vadd.f32 %v242, %v245
    %v248 = vadd.f32 %v243, %v246
    %v249 = vstv %s83
    %v250 = vmul.f32 %v107, %v249
    %v251 = vmul.f32 %v108, %v249
    %v252 = vadd.f32 %v247, %v250
    %v253 = vadd.f32 %v248, %v251
    %v254 = vstv %s84
    %v255 = vmul.f32 %v110, %v254
    %v256 = vmul.f32 %v111, %v254
    %v257 = vadd.f32 %v252, %v255
    %v258 = vadd.f32 %v253, %v256
    %v259 = vstv %s98
    %v260 = vadd.f32 %v257, %v259
    %v261 = vadd.f32 %v258, %v259
    %vm262 = vcmp.gt.f32.partialorder %v260, %v239
    %vm263 = vcmp.gt.f32.partialorder %v261, %v240
    %v264 = vsel %vm262, 5.0, %v237
    %v265 = vsel %vm263, 5.0, %v238
    %v266 = vmax.f32 %v239, %v260
    %v267 = vmax.f32 %v240, %v261
    %v268 = vstv %s85
    %v269 = vmul.f32 %v101, %v268
    %v270 = vmul.f32 %v102, %v268
    %v271 = vstv %s86
    %v272 = vmul.f32 %v104, %v271
    %v273 = vmul.f32 %v105, %v271
    %v274 = vadd.f32 %v269, %v272
    %v275 = vadd.f32 %v270, %v273
    %v276 = vstv %s87
    %v277 = vmul.f32 %v107, %v276
    %v278 = vmul.f32 %v108, %v276
    %v279 = vadd.f32 %v274, %v277
    %v280 = vadd.f32 %v275, %v278
    %v281 = vstv %s88
    %v282 = vmul.f32 %v110, %v281
    %v283 = vmul.f32 %v111, %v281
    %v284 = vadd.f32 %v279, %v282
    %v285 = vadd.f32 %v280, %v283
    %v286 = vstv %s99
    %v287 = vadd.f32 %v284, %v286
    %v288 = vadd.f32 %v285, %v286
    %vm289 = vcmp.gt.f32.partialorder %v287, %v266
    %vm290 = vcmp.gt.f32.partialorder %v288, %v267
    %v291 = vsel %vm289, 6.0, %v264
    %v292 = vsel %vm290, 6.0, %v265
    %v293 = vmax.f32 %v266, %v287
    %v294 = vmax.f32 %v267, %v288
    %v295 = vstv %s89
    %v296 = vmul.f32 %v101, %v295
    %v297 = vmul.f32 %v102, %v295
    %v298 = vstv %s90
    %v299 = vmul.f32 %v104, %v298
    %v300 = vmul.f32 %v105, %v298
    %v301 = vadd.f32 %v296, %v299
    %v302 = vadd.f32 %v297, %v300
    %v303 = vstv %s91
    %v304 = vmul.f32 %v107, %v303
    %v305 = vmul.f32 %v108, %v303
    %v306 = vadd.f32 %v301, %v304
    %v307 = vadd.f32 %v302, %v305
    %v308 = vstv %s92
    %v309 = vmul.f32 %v110, %v308
    %v310 = vmul.f32 %v111, %v308
    %v311 = vadd.f32 %v306, %v309
    %v312 = vadd.f32 %v307, %v310
    %v313 = vstv %s100
    %v314 = vadd.f32 %v311, %v313
    %v315 = vadd.f32 %v312, %v313
    %vm316 = vcmp.gt.f32.partialorder %v314, %v293
    %vm317 = vcmp.gt.f32.partialorder %v315, %v294
    %v318 = vsel %vm316, 7.0, %v291
    %v319 = vsel %vm317, 7.0, %v292
    %v320 = vpack.c.bf16 %v319, %v318
    %v322 = vunpack.c.l.b16 %v320
    %v323 = vunpack.c.h.b16 %v320
    %v324 = vpack.c.b16 %v322, %v322
    %v325 = vpack.c.b16 %v323, %v323
    %vm328 = vcmask 125952
    %329 = vst.msk [vmem:[#allocation2] sm:$0xf] %vm328, %v324
    %330 = vst.msk [vmem:[#allocation2 + $0x4] sm:$0xf] %vm328, %v325
    %v331 = vld [vmem:[%s3] sm:$0xf]
    %v332 = vld [vmem:[%s3 + $0x4] sm:$0xf]
    %v333 = vld [vmem:[%s3 + $0x8] sm:$0xf]
    %v334 = vld [vmem:[%s3 + $0xc] sm:$0xf]
    %v335 = vld [vmem:[#allocation2] sm:$0xf]
    %v336 = vld [vmem:[#allocation2 + $0x4] sm:$0xf]
    %v341 = vunpack.c.l.b16 %v331
    %v342 = vunpack.c.l.b16 %v332
    %v343 = vunpack.c.l.b16 %v333
    %v344 = vunpack.c.l.b16 %v334
    %v345 = vpack.c.b16 %v342, %v341
    %v346 = vpack.c.b16 %v344, %v343
    %v349 = vunpack.c.l.b16 %v335
    %v350 = vunpack.c.l.b16 %v336
    %v351 = vpack.c.b16 %v350, %v349
    %vm353 = vcmask 130048
    %v355 = vsel %vm353, %v345, 0
    %v358 = vsel %vm353, %v346, 0
    %360 = vmatprep.subr.bf16.mxu0 0
    %361 = vmatpush1.bf16.msra.mxu0 0
    %362 = vmatprep.subr.bf16.mxu0 0
    %363 = vmatpush1.bf16.msra.mxu0 0
    %364 = vmatprep.subr.bf16.mxu0 0
    %365 = vmatpush1.bf16.msra.mxu0 0
    %366 = vmatprep.subr.bf16.mxu0 0
    %367 = vmatpush1.bf16.msra.mxu0 0
    %368 = vmatprep.subr.bf16.mxu0 0
    %369 = vmatpush1.bf16.msra.mxu0 0
    %370 = vmatprep.subr.bf16.mxu0 0
    %371 = vmatpush1.bf16.msra.mxu0 0
    %372 = vmatprep.subr.bf16.mxu0 0
    %373 = vmatpush1.bf16.msra.mxu0 0
    %374 = vmatprep.subr.bf16.mxu0 0
    %375 = vmatpush1.bf16.msra.mxu0 %v351
    %376 = vmatprep.subr.bf16.mxu0 0
    %377 = vmatpush2.bf16.msra.mxu0 0
    %378 = vmatprep.subr.bf16.mxu0 0
    %379 = vmatpush2.bf16.msra.mxu0 0
    %380 = vmatprep.subr.bf16.mxu0 0
    %381 = vmatpush2.bf16.msra.mxu0 0
    %382 = vmatprep.subr.bf16.mxu0 0
    %383 = vmatpush2.bf16.msra.mxu0 0
    %384 = vmatprep.subr.bf16.mxu0 0
    %385 = vmatpush2.bf16.msra.mxu0 0
    %386 = vmatprep.subr.bf16.mxu0 0
    %387 = vmatpush2.bf16.msra.mxu0 0
    %388 = vmatprep.subr.bf16.mxu0 0
    %389 = vmatpush2.bf16.msra.mxu0 0
    %390 = vmatprep.subr.bf16.mxu0 0
    %391 = vmatpush2.bf16.msra.mxu0 0
    %392 = vmatprep.mubr.bf16.mxu0 0
    %393 = vmatmul.mubr.bf16.gmra.mxu0 %v355
    %v394 = vpop.f32.mrf.mxu0
    %v395 = vadd.f32 0.0, %v394
    %v396 = vpop.f32.mrf.mxu0
    %v397 = vpop.f32.mrf.mxu0
    %v398 = vadd.f32 0.0, %v397
    %v399 = vpop.f32.mrf.mxu0
    %400 = vmatprep.mubr.bf16.mxu0 0
    %401 = vmatmul.mubr.bf16.gmra.mxu0 %v358
    %v402 = vpop.f32.mrf.mxu0
    %v403 = vadd.f32 0.0, %v402
    %v404 = vpop.f32.mrf.mxu0
    %v405 = vpop.f32.mrf.mxu0
    %v406 = vadd.f32 0.0, %v405
    %v407 = vpop.f32.mrf.mxu0
    %408 = vdwg.mxu0
    %v409 = vpack.c.bf16 %v398, %v395
    %v410 = vpack.c.bf16 %v406, %v403
    %v411 = vld [vmem:[%s4] sm:$0xf]
    %v412 = vld [vmem:[%s4 + $0x4] sm:$0xf]
    %v415 = vunpack.c.l.b16 %v411
    %v416 = vunpack.c.l.b16 %v412
    %v417 = vpack.c.b16 %v416, %v415
    %v420 = vsel %vm353, %v409, 0
    %v423 = vsel %vm353, %v410, 0
    %425 = vmatprep.subr.bf16.mxu0 0
    %426 = vmatpush1.bf16.msra.mxu0 0
    %427 = vmatprep.subr.bf16.mxu0 0
    %428 = vmatpush1.bf16.msra.mxu0 0
    %429 = vmatprep.subr.bf16.mxu0 0
    %430 = vmatpush1.bf16.msra.mxu0 0
    %431 = vmatprep.subr.bf16.mxu0 0
    %432 = vmatpush1.bf16.msra.mxu0 0
    %433 = vmatprep.subr.bf16.mxu0 0
    %434 = vmatpush1.bf16.msra.mxu0 0
    %435 = vmatprep.subr.bf16.mxu0 0
    %436 = vmatpush1.bf16.msra.mxu0 0
    %437 = vmatprep.subr.bf16.mxu0 0
    %438 = vmatpush1.bf16.msra.mxu0 0
    %439 = vmatprep.subr.bf16.mxu0 0
    %440 = vmatpush1.bf16.msra.mxu0 %v417
    %441 = vmatprep.subr.bf16.mxu0 0
    %442 = vmatpush2.bf16.msra.mxu0 0
    %443 = vmatprep.subr.bf16.mxu0 0
    %444 = vmatpush2.bf16.msra.mxu0 0
    %445 = vmatprep.subr.bf16.mxu0 0
    %446 = vmatpush2.bf16.msra.mxu0 0
    %447 = vmatprep.subr.bf16.mxu0 0
    %448 = vmatpush2.bf16.msra.mxu0 0
    %449 = vmatprep.subr.bf16.mxu0 0
    %450 = vmatpush2.bf16.msra.mxu0 0
    %451 = vmatprep.subr.bf16.mxu0 0
    %452 = vmatpush2.bf16.msra.mxu0 0
    %453 = vmatprep.subr.bf16.mxu0 0
    %454 = vmatpush2.bf16.msra.mxu0 0
    %455 = vmatprep.subr.bf16.mxu0 0
    %456 = vmatpush2.bf16.msra.mxu0 0
    %457 = vmatprep.mubr.bf16.mxu0 0
    %458 = vmatmul.mubr.bf16.gmra.mxu0 %v420
    %v459 = vpop.f32.mrf.mxu0
    %v460 = vadd.f32 0.0, %v459
    %v461 = vpop.f32.mrf.mxu0
    %v462 = vpop.f32.mrf.mxu0
    %v463 = vadd.f32 0.0, %v462
    %v464 = vpop.f32.mrf.mxu0
    %465 = vmatprep.mubr.bf16.mxu0 0
    %466 = vmatmul.mubr.bf16.gmra.mxu0 %v423
    %v467 = vpop.f32.mrf.mxu0
    %v468 = vadd.f32 0.0, %v467
    %v469 = vpop.f32.mrf.mxu0
    %v470 = vpop.f32.mrf.mxu0
    %v471 = vadd.f32 0.0, %v470
    %v472 = vpop.f32.mrf.mxu0
    %473 = vdwg.mxu0
    %v474 = vcvt.f32.s32.to.zero.pseudo %v460
    %v475 = vcvt.f32.s32.to.zero.pseudo %v463
    %v476 = vcvt.f32.s32.to.zero.pseudo %v468
    %v477 = vcvt.f32.s32.to.zero.pseudo %v471
    %vm478 = vcmask 261120
    %479 = vst.msk [vmem:[#allocation10] sm:$0xff] %vm478, %v474
    %480 = vst.msk [vmem:[#allocation10 + $0x8] sm:$0xff] %vm478, %v475
    %481 = vst.msk [vmem:[#allocation10 + $0x10] sm:$0xff] %vm478, %v476
    %482 = vst.msk [vmem:[#allocation10 + $0x18] sm:$0xff] %vm478, %v477
    %s483 = scalar_lea.vmem [#allocation3], 64
    %v484 = vld [vmem:[%s483] sm:$0xff]
    %v485 = vld [vmem:[%s483 + $0x8] sm:$0xff]
    %s486 = scalar_lea.vmem [#allocation3], 80
    %v487 = vld [vmem:[%s486] sm:$0xff]
    %v488 = vld [vmem:[%s486 + $0x8] sm:$0xff]
    %s489 = scalar_lea.vmem [#allocation3], 96
    %v490 = vld [vmem:[%s489] sm:$0xff]
    %v491 = vld [vmem:[%s489 + $0x8] sm:$0xff]
    %s492 = scalar_lea.vmem [#allocation3], 112
    %v493 = vld [vmem:[%s492] sm:$0xff]
    %v494 = vld [vmem:[%s492 + $0x8] sm:$0xff]
    %v495 = vmul.f32 %v484, %v112
    %v496 = vmul.f32 %v485, %v112
    %v497 = vmul.f32 %v487, %v115
    %v498 = vmul.f32 %v488, %v115
    %v499 = vadd.f32 %v495, %v497
    %v500 = vadd.f32 %v496, %v498
    %v501 = vmul.f32 %v490, %v120
    %v502 = vmul.f32 %v491, %v120
    %v503 = vadd.f32 %v499, %v501
    %v504 = vadd.f32 %v500, %v502
    %v505 = vmul.f32 %v493, %v125
    %v506 = vmul.f32 %v494, %v125
    %v507 = vadd.f32 %v503, %v505
    %v508 = vadd.f32 %v504, %v506
    %v509 = vadd.f32 %v507, %v130
    %v510 = vadd.f32 %v508, %v130
    %v511 = vmul.f32 %v484, %v133
    %v512 = vmul.f32 %v485, %v133
    %v513 = vmul.f32 %v487, %v136
    %v514 = vmul.f32 %v488, %v136
    %v515 = vadd.f32 %v511, %v513
    %v516 = vadd.f32 %v512, %v514
    %v517 = vmul.f32 %v490, %v141
    %v518 = vmul.f32 %v491, %v141
    %v519 = vadd.f32 %v515, %v517
    %v520 = vadd.f32 %v516, %v518
    %v521 = vmul.f32 %v493, %v146
    %v522 = vmul.f32 %v494, %v146
    %v523 = vadd.f32 %v519, %v521
    %v524 = vadd.f32 %v520, %v522
    %v525 = vadd.f32 %v523, %v151
    %v526 = vadd.f32 %v524, %v151
    %vm527 = vcmp.gt.f32.partialorder %v525, %v509
    %vm528 = vcmp.gt.f32.partialorder %v526, %v510
    %v529 = vsel %vm527, 1.0, 0.0
    %v530 = vsel %vm528, 1.0, 0.0
    %v531 = vmax.f32 %v509, %v525
    %v532 = vmax.f32 %v510, %v526
    %v533 = vmul.f32 %v484, %v160
    %v534 = vmul.f32 %v485, %v160
    %v535 = vmul.f32 %v487, %v163
    %v536 = vmul.f32 %v488, %v163
    %v537 = vadd.f32 %v533, %v535
    %v538 = vadd.f32 %v534, %v536
    %v539 = vmul.f32 %v490, %v168
    %v540 = vmul.f32 %v491, %v168
    %v541 = vadd.f32 %v537, %v539
    %v542 = vadd.f32 %v538, %v540
    %v543 = vmul.f32 %v493, %v173
    %v544 = vmul.f32 %v494, %v173
    %v545 = vadd.f32 %v541, %v543
    %v546 = vadd.f32 %v542, %v544
    %v547 = vadd.f32 %v545, %v178
    %v548 = vadd.f32 %v546, %v178
    %vm549 = vcmp.gt.f32.partialorder %v547, %v531
    %vm550 = vcmp.gt.f32.partialorder %v548, %v532
    %v551 = vsel %vm549, 2.0, %v529
    %v552 = vsel %vm550, 2.0, %v530
    %v553 = vmax.f32 %v531, %v547
    %v554 = vmax.f32 %v532, %v548
    %v555 = vmul.f32 %v484, %v187
    %v556 = vmul.f32 %v485, %v187
    %v557 = vmul.f32 %v487, %v190
    %v558 = vmul.f32 %v488, %v190
    %v559 = vadd.f32 %v555, %v557
    %v560 = vadd.f32 %v556, %v558
    %v561 = vmul.f32 %v490, %v195
    %v562 = vmul.f32 %v491, %v195
    %v563 = vadd.f32 %v559, %v561
    %v564 = vadd.f32 %v560, %v562
    %v565 = vmul.f32 %v493, %v200
    %v566 = vmul.f32 %v494, %v200
    %v567 = vadd.f32 %v563, %v565
    %v568 = vadd.f32 %v564, %v566
    %v569 = vadd.f32 %v567, %v205
    %v570 = vadd.f32 %v568, %v205
    %vm571 = vcmp.gt.f32.partialorder %v569, %v553
    %vm572 = vcmp.gt.f32.partialorder %v570, %v554
    %v573 = vsel %vm571, 3.0, %v551
    %v574 = vsel %vm572, 3.0, %v552
    %v575 = vmax.f32 %v553, %v569
    %v576 = vmax.f32 %v554, %v570
    %v577 = vmul.f32 %v484, %v214
    %v578 = vmul.f32 %v485, %v214
    %v579 = vmul.f32 %v487, %v217
    %v580 = vmul.f32 %v488, %v217
    %v581 = vadd.f32 %v577, %v579
    %v582 = vadd.f32 %v578, %v580
    %v583 = vmul.f32 %v490, %v222
    %v584 = vmul.f32 %v491, %v222
    %v585 = vadd.f32 %v581, %v583
    %v586 = vadd.f32 %v582, %v584
    %v587 = vmul.f32 %v493, %v227
    %v588 = vmul.f32 %v494, %v227
    %v589 = vadd.f32 %v585, %v587
    %v590 = vadd.f32 %v586, %v588
    %v591 = vadd.f32 %v589, %v232
    %v592 = vadd.f32 %v590, %v232
    %vm593 = vcmp.gt.f32.partialorder %v591, %v575
    %vm594 = vcmp.gt.f32.partialorder %v592, %v576
    %v595 = vsel %vm593, 4.0, %v573
    %v596 = vsel %vm594, 4.0, %v574
    %v597 = vmax.f32 %v575, %v591
    %v598 = vmax.f32 %v576, %v592
    %v599 = vmul.f32 %v484, %v241
    %v600 = vmul.f32 %v485, %v241
    %v601 = vmul.f32 %v487, %v244
    %v602 = vmul.f32 %v488, %v244
    %v603 = vadd.f32 %v599, %v601
    %v604 = vadd.f32 %v600, %v602
    %v605 = vmul.f32 %v490, %v249
    %v606 = vmul.f32 %v491, %v249
    %v607 = vadd.f32 %v603, %v605
    %v608 = vadd.f32 %v604, %v606
    %v609 = vmul.f32 %v493, %v254
    %v610 = vmul.f32 %v494, %v254
    %v611 = vadd.f32 %v607, %v609
    %v612 = vadd.f32 %v608, %v610
    %v613 = vadd.f32 %v611, %v259
    %v614 = vadd.f32 %v612, %v259
    %vm615 = vcmp.gt.f32.partialorder %v613, %v597
    %vm616 = vcmp.gt.f32.partialorder %v614, %v598
    %v617 = vsel %vm615, 5.0, %v595
    %v618 = vsel %vm616, 5.0, %v596
    %v619 = vmax.f32 %v597, %v613
    %v620 = vmax.f32 %v598, %v614
    %v621 = vmul.f32 %v484, %v268
    %v622 = vmul.f32 %v485, %v268
    %v623 = vmul.f32 %v487, %v271
    %v624 = vmul.f32 %v488, %v271
    %v625 = vadd.f32 %v621, %v623
    %v626 = vadd.f32 %v622, %v624
    %v627 = vmul.f32 %v490, %v276
    %v628 = vmul.f32 %v491, %v276
    %v629 = vadd.f32 %v625, %v627
    %v630 = vadd.f32 %v626, %v628
    %v631 = vmul.f32 %v493, %v281
    %v632 = vmul.f32 %v494, %v281
    %v633 = vadd.f32 %v629, %v631
    %v634 = vadd.f32 %v630, %v632
    %v635 = vadd.f32 %v633, %v286
    %v636 = vadd.f32 %v634, %v286
    %vm637 = vcmp.gt.f32.partialorder %v635, %v619
    %vm638 = vcmp.gt.f32.partialorder %v636, %v620
    %v639 = vsel %vm637, 6.0, %v617
    %v640 = vsel %vm638, 6.0, %v618
    %v641 = vmax.f32 %v619, %v635
    %v642 = vmax.f32 %v620, %v636
    %v643 = vmul.f32 %v484, %v295
    %v644 = vmul.f32 %v485, %v295
    %v645 = vmul.f32 %v487, %v298
    %v646 = vmul.f32 %v488, %v298
    %v647 = vadd.f32 %v643, %v645
    %v648 = vadd.f32 %v644, %v646
    %v649 = vmul.f32 %v490, %v303
    %v650 = vmul.f32 %v491, %v303
    %v651 = vadd.f32 %v647, %v649
    %v652 = vadd.f32 %v648, %v650
    %v653 = vmul.f32 %v493, %v308
    %v654 = vmul.f32 %v494, %v308
    %v655 = vadd.f32 %v651, %v653
    %v656 = vadd.f32 %v652, %v654
    %v657 = vadd.f32 %v655, %v313
    %v658 = vadd.f32 %v656, %v313
    %vm659 = vcmp.gt.f32.partialorder %v657, %v641
    %vm660 = vcmp.gt.f32.partialorder %v658, %v642
    %v661 = vsel %vm659, 7.0, %v639
    %v662 = vsel %vm660, 7.0, %v640
    %v663 = vpack.c.bf16 %v662, %v661
    %v665 = vunpack.c.l.b16 %v663
    %v666 = vunpack.c.h.b16 %v663
    %v667 = vpack.c.b16 %v665, %v665
    %v668 = vpack.c.b16 %v666, %v666
    %671 = vst.msk [vmem:[#allocation2] sm:$0xf] %vm328, %v667
    %672 = vst.msk [vmem:[#allocation2 + $0x4] sm:$0xf] %vm328, %v668
    %v673 = vld [vmem:[%s3] sm:$0xf]
    %v674 = vld [vmem:[%s3 + $0x4] sm:$0xf]
    %v675 = vld [vmem:[%s3 + $0x8] sm:$0xf]
    %v676 = vld [vmem:[%s3 + $0xc] sm:$0xf]
    %v677 = vld [vmem:[#allocation2] sm:$0xf]
    %v678 = vld [vmem:[#allocation2 + $0x4] sm:$0xf]
    %v683 = vunpack.c.l.b16 %v673
    %v684 = vunpack.c.l.b16 %v674
    %v685 = vunpack.c.l.b16 %v675
    %v686 = vunpack.c.l.b16 %v676
    %v687 = vpack.c.b16 %v684, %v683
    %v688 = vpack.c.b16 %v686, %v685
    %v691 = vunpack.c.l.b16 %v677
    %v692 = vunpack.c.l.b16 %v678
    %v693 = vpack.c.b16 %v692, %v691
    %v696 = vsel %vm353, %v687, 0
    %v699 = vsel %vm353, %v688, 0
    %701 = vmatprep.subr.bf16.mxu0 0
    %702 = vmatpush1.bf16.msra.mxu0 0
    %703 = vmatprep.subr.bf16.mxu0 0
    %704 = vmatpush1.bf16.msra.mxu0 0
    %705 = vmatprep.subr.bf16.mxu0 0
    %706 = vmatpush1.bf16.msra.mxu0 0
    %707 = vmatprep.subr.bf16.mxu0 0
    %708 = vmatpush1.bf16.msra.mxu0 0
    %709 = vmatprep.subr.bf16.mxu0 0
    %710 = vmatpush1.bf16.msra.mxu0 0
    %711 = vmatprep.subr.bf16.mxu0 0
    %712 = vmatpush1.bf16.msra.mxu0 0
    %713 = vmatprep.subr.bf16.mxu0 0
    %714 = vmatpush1.bf16.msra.mxu0 0
    %715 = vmatprep.subr.bf16.mxu0 0
    %716 = vmatpush1.bf16.msra.mxu0 %v693
    %717 = vmatprep.subr.bf16.mxu0 0
    %718 = vmatpush2.bf16.msra.mxu0 0
    %719 = vmatprep.subr.bf16.mxu0 0
    %720 = vmatpush2.bf16.msra.mxu0 0
    %721 = vmatprep.subr.bf16.mxu0 0
    %722 = vmatpush2.bf16.msra.mxu0 0
    %723 = vmatprep.subr.bf16.mxu0 0
    %724 = vmatpush2.bf16.msra.mxu0 0
    %725 = vmatprep.subr.bf16.mxu0 0
    %726 = vmatpush2.bf16.msra.mxu0 0
    %727 = vmatprep.subr.bf16.mxu0 0
    %728 = vmatpush2.bf16.msra.mxu0 0
    %729 = vmatprep.subr.bf16.mxu0 0
    %730 = vmatpush2.bf16.msra.mxu0 0
    %731 = vmatprep.subr.bf16.mxu0 0
    %732 = vmatpush2.bf16.msra.mxu0 0
    %733 = vmatprep.mubr.bf16.mxu0 0
    %734 = vmatmul.mubr.bf16.gmra.mxu0 %v696
    %v735 = vpop.f32.mrf.mxu0
    %v736 = vadd.f32 0.0, %v735
    %v737 = vpop.f32.mrf.mxu0
    %v738 = vpop.f32.mrf.mxu0
    %v739 = vadd.f32 0.0, %v738
    %v740 = vpop.f32.mrf.mxu0
    %741 = vmatprep.mubr.bf16.mxu0 0
    %742 = vmatmul.mubr.bf16.gmra.mxu0 %v699
    %v743 = vpop.f32.mrf.mxu0
    %v744 = vadd.f32 0.0, %v743
    %v745 = vpop.f32.mrf.mxu0
    %v746 = vpop.f32.mrf.mxu0
    %v747 = vadd.f32 0.0, %v746
    %v748 = vpop.f32.mrf.mxu0
    %749 = vdwg.mxu0
    %v750 = vpack.c.bf16 %v739, %v736
    %v751 = vpack.c.bf16 %v747, %v744
    %v752 = vld [vmem:[%s4] sm:$0xf]
    %v753 = vld [vmem:[%s4 + $0x4] sm:$0xf]
    %v756 = vunpack.c.l.b16 %v752
    %v757 = vunpack.c.l.b16 %v753
    %v758 = vpack.c.b16 %v757, %v756
    %v761 = vsel %vm353, %v750, 0
    %v764 = vsel %vm353, %v751, 0
    %766 = vmatprep.subr.bf16.mxu0 0
    %767 = vmatpush1.bf16.msra.mxu0 0
    %768 = vmatprep.subr.bf16.mxu0 0
    %769 = vmatpush1.bf16.msra.mxu0 0
    %770 = vmatprep.subr.bf16.mxu0 0
    %771 = vmatpush1.bf16.msra.mxu0 0
    %772 = vmatprep.subr.bf16.mxu0 0
    %773 = vmatpush1.bf16.msra.mxu0 0
    %774 = vmatprep.subr.bf16.mxu0 0
    %775 = vmatpush1.bf16.msra.mxu0 0
    %776 = vmatprep.subr.bf16.mxu0 0
    %777 = vmatpush1.bf16.msra.mxu0 0
    %778 = vmatprep.subr.bf16.mxu0 0
    %779 = vmatpush1.bf16.msra.mxu0 0
    %780 = vmatprep.subr.bf16.mxu0 0
    %781 = vmatpush1.bf16.msra.mxu0 %v758
    %782 = vmatprep.subr.bf16.mxu0 0
    %783 = vmatpush2.bf16.msra.mxu0 0
    %784 = vmatprep.subr.bf16.mxu0 0
    %785 = vmatpush2.bf16.msra.mxu0 0
    %786 = vmatprep.subr.bf16.mxu0 0
    %787 = vmatpush2.bf16.msra.mxu0 0
    %788 = vmatprep.subr.bf16.mxu0 0
    %789 = vmatpush2.bf16.msra.mxu0 0
    %790 = vmatprep.subr.bf16.mxu0 0
    %791 = vmatpush2.bf16.msra.mxu0 0
    %792 = vmatprep.subr.bf16.mxu0 0
    %793 = vmatpush2.bf16.msra.mxu0 0
    %794 = vmatprep.subr.bf16.mxu0 0
    %795 = vmatpush2.bf16.msra.mxu0 0
    %796 = vmatprep.subr.bf16.mxu0 0
    %797 = vmatpush2.bf16.msra.mxu0 0
    %798 = vmatprep.mubr.bf16.mxu0 0
    %799 = vmatmul.mubr.bf16.gmra.mxu0 %v761
    %v800 = vpop.f32.mrf.mxu0
    %v801 = vadd.f32 0.0, %v800
    %v802 = vpop.f32.mrf.mxu0
    %v803 = vpop.f32.mrf.mxu0
    %v804 = vadd.f32 0.0, %v803
    %v805 = vpop.f32.mrf.mxu0
    %806 = vmatprep.mubr.bf16.mxu0 0
    %807 = vmatmul.mubr.bf16.gmra.mxu0 %v764
    %v808 = vpop.f32.mrf.mxu0
    %v809 = vadd.f32 0.0, %v808
    %v810 = vpop.f32.mrf.mxu0
    %v811 = vpop.f32.mrf.mxu0
    %v812 = vadd.f32 0.0, %v811
    %v813 = vpop.f32.mrf.mxu0
    %814 = vdwg.mxu0
    %v815 = vcvt.f32.s32.to.zero.pseudo %v801
    %v816 = vcvt.f32.s32.to.zero.pseudo %v804
    %v817 = vcvt.f32.s32.to.zero.pseudo %v809
    %v818 = vcvt.f32.s32.to.zero.pseudo %v812
    %s819 = scalar_lea.vmem [#allocation10], 32
    %820 = vst.msk [vmem:[%s819] sm:$0xff] %vm478, %v815
    %821 = vst.msk [vmem:[%s819 + $0x8] sm:$0xff] %vm478, %v816
    %822 = vst.msk [vmem:[%s819 + $0x10] sm:$0xff] %vm478, %v817
    %823 = vst.msk [vmem:[%s819 + $0x18] sm:$0xff] %vm478, %v818
    // Predicated region
    $region34: #{onnx_net_forward.1} parent=1 // pred_check
      _
    $region35: #{onnx_net_forward.1} parent=1 // pred_check_branch
      %825 = sbr.rel (0) target = $region37
    $region36: #{onnx_net_forward.1} parent=1 // pred_region
      %s827 = ssub.s32 1024, 1024
      %828 = vsyncadd [#allocation5], %s827
      %s829 = sshll.u32 [#allocation10], 4
      %s830 = int_to_ptr.vmem [resolvable:$true] %s829
      %835 = dma.vmem_to_hbm [thread:$0]  %s830, 1024, %s5, [#allocation5], 128, 128, 8
    $region37: #{onnx_net_forward.1} parent=1 // pred_fallthru
      _
    // Predicated region
    $region38: #{onnx_net_forward.1} parent=1 // pred_check
      _
    $region39: #{onnx_net_forward.1} parent=1 // pred_check_branch
      %837 = sbr.rel (0) target = $region41
    $region40: #{onnx_net_forward.1} parent=1 // pred_region
      %838 = dma.done [#allocation5], 1024
    $region41: #{onnx_net_forward.1} parent=1 // pred_fallthru
      _
    %839 = vsyncpa [#allocation4], 1
    %840 = vsyncpa [#allocation5], 1
    %841 = vsyncpa [#allocation6], 1
    %842 = vsyncpa [#allocation9], 1

</llo_original>
